<compile_context>
chip_gen: v7x
topology: tpu7x:2x2x1
jax: 0.10.0
libtpu: 0.0.40
codegen_flags: <defaults>
</compile_context>

<pallas_src>
import functools

import jax
import jax.numpy as jnp
from jax.experimental import pallas as pl
from jax.experimental.pallas import tpu as pltpu

LATENT_DIM = 5
HIDDEN = (10, 5)
OUTPUT_DIM = 2
BN_EPS = 1e-5

# ---- packed parameter slab layout (sublane-aligned sections) ----------------
# rows  0:10 : cols 0:5  = W1^T (10,5) | col 5  = gamma1 | col 6  = beta1
# rows 16:21 : cols 0:10 = W2^T (5,10) | col 10 = gamma2 | col 11 = beta2
# rows 24:26 : cols 0:5  = W3^T (2,5)  | col 5  = b3
PARAM_ROWS = 32
PARAM_COLS = 16

LANE = 128  # pad batch (lane axis) to a multiple of this


def generator_kernel(x_ref, p_ref, out_ref, *, true_batch):
    """Whole-network forward on a (feat, B_pad) resident batch."""
    x = x_ref[...]                                  # (5, Bp) f32
    bpad = x.shape[1]
    inv_n = 1.0 / true_batch                        # true batch, not padded

    if bpad != true_batch:
        lane = jax.lax.broadcasted_iota(jnp.int32, (1, bpad), 1)
        valid = (lane < true_batch).astype(jnp.float32)
    else:
        valid = None

    def bn_relu6(h, gamma, beta):
        # Padded columns of h are exactly zero (pre-BN biases are folded
        # away), so plain lane-sums with inv_n = 1/true_batch are exact.
        mean = jnp.sum(h, axis=1, keepdims=True) * inv_n
        mean_sq = jnp.sum(h * h, axis=1, keepdims=True) * inv_n
        var = mean_sq - mean * mean                 # biased (training-mode) var
        scale = jax.lax.rsqrt(var + BN_EPS) * gamma
        shift = beta - mean * scale
        out = jnp.clip(h * scale + shift, 0.0, 6.0)
        if valid is not None:
            out = out * valid                       # keep padded cols at zero
        return out

    # Block 1: Linear(5->10) (bias folded by BN) + BN + ReLU6
    h = jnp.dot(p_ref[0:10, 0:5], x, preferred_element_type=jnp.float32)
    h = bn_relu6(h, p_ref[0:10, 5:6], p_ref[0:10, 6:7])

    # Block 2: Linear(10->5) (bias folded by BN) + BN + ReLU6
    h = jnp.dot(p_ref[16:21, 0:10], h, preferred_element_type=jnp.float32)
    h = bn_relu6(h, p_ref[16:21, 10:11], p_ref[16:21, 11:12])

    # Output: Linear(5->2) + sigmoid, lane-dense (2, Bp) store
    h = jnp.dot(p_ref[24:26, 0:5], h, preferred_element_type=jnp.float32)
    out_ref[...] = jax.nn.sigmoid(h + p_ref[24:26, 5:6])


def _pick_vmem_limit(batch_pad):
    """Scoped-VMEM request derived from the resident footprint, clamped to
    the device's physical VMEM with headroom (generation-aware)."""
    floats_per_col = LATENT_DIM + HIDDEN[0] + HIDDEN[1] + OUTPUT_DIM  # x,h1,h2,out
    per_col_bytes = 4 * floats_per_col * 4          # ~4x for temporaries
    needed = batch_pad * per_col_bytes + PARAM_ROWS * LANE * 4 + (1 << 20)
    try:
        cap = int(getattr(pltpu.get_tpu_info(), "vmem_capacity_bytes", 64 << 20))
    except Exception:  # pragma: no cover - conservative fallback off-TPU
        cap = 64 << 20
    # Never request less than 32 MiB (the v6e/v7x default) but stay well
    # inside physical VMEM (important on v7x's 64 MiB).
    return int(min(max(needed, 32 << 20), cap * 7 // 8))


def _generator_forward(x_fb, slab):
    """x_fb: (LATENT_DIM, B) f32, feature-major.  Returns (OUTPUT_DIM, B)."""
    _, batch = x_fb.shape
    batch_pad = ((batch + LANE - 1) // LANE) * LANE
    if batch_pad != batch:
        x_fb = jnp.pad(x_fb, ((0, 0), (0, batch_pad - batch)))

    flops = 2 * batch_pad * (LATENT_DIM * HIDDEN[0]
                             + HIDDEN[0] * HIDDEN[1]
                             + HIDDEN[1] * OUTPUT_DIM)
    bytes_accessed = 4 * (batch_pad * (LATENT_DIM + OUTPUT_DIM)
                          + PARAM_ROWS * PARAM_COLS)

    vmem_spec = pl.BlockSpec(memory_space=pltpu.MemorySpace.VMEM)
    out = pl.pallas_call(
        functools.partial(generator_kernel, true_batch=batch),
        out_shape=jax.ShapeDtypeStruct((OUTPUT_DIM, batch_pad), jnp.float32),
        in_specs=[vmem_spec, vmem_spec],
        out_specs=vmem_spec,
        compiler_params=pltpu.CompilerParams(
            vmem_limit_bytes=_pick_vmem_limit(batch_pad)),
        cost_estimate=pl.CostEstimate(
            flops=flops,
            transcendentals=batch_pad * OUTPUT_DIM + HIDDEN[0] + HIDDEN[1],
            bytes_accessed=bytes_accessed),
    )(x_fb, slab)

    if batch_pad != batch:
        out = out[:, :batch]
    return out


generator_forward = jax.jit(_generator_forward)


def init_params(key):
    """Deterministic PyTorch-like init.  Keeps b1/b2 for the reference even
    though the kernel folds them away (training-mode BN cancels them)."""
    def linear(key, fan_in, fan_out):
        k_w, k_b = jax.random.split(key)
        bound = 1.0 / jnp.sqrt(float(fan_in))
        w = jax.random.uniform(k_w, (fan_in, fan_out), jnp.float32, -bound, bound)
        b = jax.random.uniform(k_b, (1, fan_out), jnp.float32, -bound, bound)
        return w, b

    k1, k2, k3, k4, k5 = jax.random.split(key, 5)
    w1, b1 = linear(k1, LATENT_DIM, HIDDEN[0])
    w2, b2 = linear(k2, HIDDEN[0], HIDDEN[1])
    w3, b3 = linear(k3, HIDDEN[1], OUTPUT_DIM)

    # Non-trivial BN affine params so the BN path is exercised.
    g1 = 1.0 + 0.1 * jax.random.normal(k4, (1, HIDDEN[0]), jnp.float32)
    be1 = 0.1 * jax.random.normal(jax.random.fold_in(k4, 1), (1, HIDDEN[0]), jnp.float32)
    g2 = 1.0 + 0.1 * jax.random.normal(k5, (1, HIDDEN[1]), jnp.float32)
    be2 = 0.1 * jax.random.normal(jax.random.fold_in(k5, 1), (1, HIDDEN[1]), jnp.float32)

    return (w1, b1, g1, be1, w2, b2, g2, be2, w3, b3)


def pack_params(params):
    """Pack all kernel-visible parameters into one (32, 16) f32 slab with
    each section starting on an 8-row sublane boundary.  b1/b2 are omitted
    on purpose (cancelled by training-mode BN)."""
    (w1, b1, g1, be1, w2, b2, g2, be2, w3, b3) = params
    slab = jnp.zeros((PARAM_ROWS, PARAM_COLS), jnp.float32)
    slab = slab.at[0:10, 0:5].set(w1.T)
    slab = slab.at[0:10, 5].set(g1.reshape(-1))
    slab = slab.at[0:10, 6].set(be1.reshape(-1))
    slab = slab.at[16:21, 0:10].set(w2.T)
    slab = slab.at[16:21, 10].set(g2.reshape(-1))
    slab = slab.at[16:21, 11].set(be2.reshape(-1))
    slab = slab.at[24:26, 0:5].set(w3.T)
    slab = slab.at[24:26, 5].set(b3.reshape(-1))
    return slab


def reference_forward(x, params):
    """Pure-JAX reference mirroring the PyTorch forward exactly
    (batch-major (B, feat), training-mode BN, biases included)."""
    (w1, b1, g1, be1, w2, b2, g2, be2, w3, b3) = params

    def bn(h, gamma, beta):
        mean = jnp.mean(h, axis=0, keepdims=True)
        var = jnp.mean((h - mean) * (h - mean), axis=0, keepdims=True)
        return (h - mean) * jax.lax.rsqrt(var + BN_EPS) * gamma + beta

    h = x @ w1 + b1
    h = jnp.clip(bn(h, g1, be1), 0.0, 6.0)
    h = h @ w2 + b2
    h = jnp.clip(bn(h, g2, be2), 0.0, 6.0)
    h = h @ w3 + b3
    return jax.nn.sigmoid(h)


if __name__ == "__main__":
    key = jax.random.PRNGKey(0)
    k_x, k_p = jax.random.split(key)

    params = init_params(k_p)
    slab = pack_params(params)

    # batch=128: lane-dense fast path; batch=100: exercises pad+mask path.
    for batch in (128, 100):
        x_fb = jax.random.normal(jax.random.fold_in(k_x, batch),
                                 (LATENT_DIM, batch), jnp.float32)
        out_fb = jax.block_until_ready(generator_forward(x_fb, slab))
        assert out_fb.shape == (OUTPUT_DIM, batch), out_fb.shape

        ref = reference_forward(x_fb.T, params)          # (batch, 2)
        err = float(jnp.max(jnp.abs(out_fb.T - ref)))
        # Differences vs the reference come only from the bias fold, the
        # E[h^2]-E[h]^2 variance reformulation and EUP rounding -> tiny.
        assert jnp.allclose(out_fb.T, ref, atol=1e-4, rtol=1e-4), err

    print("KERNEL_OK")
</pallas_src>

<mosaic_0001>
module attributes {stable_mosaic.version = 11 : i64} {
  func.func @generator_kernel(%arg0: memref<5x128xf32, #tpu.memory_space<vmem>>, %arg1: memref<32x16xf32, #tpu.memory_space<vmem>>, %arg2: memref<2x128xf32, #tpu.memory_space<vmem>>) attributes {dimension_semantics = [], scalar_prefetch = 0 : i64, scratch_operands = 0 : i64, tpu.core_type = #tpu.core_type<tc>} {
    %c0 = arith.constant 0 : index
    %c0_0 = arith.constant 0 : index
    %0 = vector.load %arg0[%c0, %c0_0] : memref<5x128xf32, #tpu.memory_space<vmem>>, vector<5x128xf32>
    %c0_1 = arith.constant 0 : index
    %c0_2 = arith.constant 0 : index
    %1 = vector.load %arg1[%c0_1, %c0_2] : memref<32x16xf32, #tpu.memory_space<vmem>>, vector<10x5xf32>
    %cst = arith.constant dense<0.000000e+00> : vector<10x128xf32>
    %2 = tpu.matmul %1, %0, %cst {dimension_numbers = #tpu.dot_dimension_numbers<[1], [0], [0], [1], [0, 0, 1, 1], [], []>} : vector<10x5xf32>, vector<5x128xf32>, vector<10x128xf32> -> vector<10x128xf32>
    %c0_3 = arith.constant 0 : index
    %c5 = arith.constant 5 : index
    %3 = vector.load %arg1[%c0_3, %c5] : memref<32x16xf32, #tpu.memory_space<vmem>>, vector<10x1xf32>
    %c0_4 = arith.constant 0 : index
    %c6 = arith.constant 6 : index
    %4 = vector.load %arg1[%c0_4, %c6] : memref<32x16xf32, #tpu.memory_space<vmem>>, vector<10x1xf32>
    %cst_5 = arith.constant dense<0.000000e+00> : vector<10xf32>
    %5 = vector.multi_reduction <add>, %2, %cst_5 [1] : vector<10x128xf32> to vector<10xf32>
    %6 = vector.shape_cast %5 : vector<10xf32> to vector<10x1xf32>
    %cst_6 = arith.constant 7.812500e-03 : f32
    %7 = vector.broadcast %cst_6 : f32 to vector<10x1xf32>
    %8 = arith.mulf %6, %7 : vector<10x1xf32>
    %9 = arith.mulf %2, %2 : vector<10x128xf32>
    %cst_7 = arith.constant dense<0.000000e+00> : vector<10xf32>
    %10 = vector.multi_reduction <add>, %9, %cst_7 [1] : vector<10x128xf32> to vector<10xf32>
    %11 = vector.shape_cast %10 : vector<10xf32> to vector<10x1xf32>
    %cst_8 = arith.constant 7.812500e-03 : f32
    %12 = vector.broadcast %cst_8 : f32 to vector<10x1xf32>
    %13 = arith.mulf %11, %12 : vector<10x1xf32>
    %14 = arith.mulf %8, %8 : vector<10x1xf32>
    %15 = arith.subf %13, %14 : vector<10x1xf32>
    %cst_9 = arith.constant 9.99999974E-6 : f32
    %16 = vector.broadcast %cst_9 : f32 to vector<10x1xf32>
    %17 = arith.addf %15, %16 : vector<10x1xf32>
    %18 = math.rsqrt %17 : vector<10x1xf32>
    %19 = arith.mulf %18, %3 : vector<10x1xf32>
    %20 = arith.mulf %8, %19 : vector<10x1xf32>
    %21 = arith.subf %4, %20 : vector<10x1xf32>
    %22 = vector.broadcast %19 : vector<10x1xf32> to vector<10x128xf32>
    %23 = arith.mulf %2, %22 : vector<10x128xf32>
    %24 = vector.broadcast %21 : vector<10x1xf32> to vector<10x128xf32>
    %25 = arith.addf %23, %24 : vector<10x128xf32>
    %cst_10 = arith.constant 0.000000e+00 : f32
    %cst_11 = arith.constant 6.000000e+00 : f32
    %26 = vector.broadcast %cst_10 : f32 to vector<10x128xf32>
    %27 = arith.maximumf %26, %25 : vector<10x128xf32>
    %28 = vector.broadcast %cst_11 : f32 to vector<10x128xf32>
    %29 = arith.minimumf %28, %27 : vector<10x128xf32>
    %c16 = arith.constant 16 : index
    %c0_12 = arith.constant 0 : index
    %30 = vector.load %arg1[%c16, %c0_12] : memref<32x16xf32, #tpu.memory_space<vmem>>, vector<5x10xf32>
    %cst_13 = arith.constant dense<0.000000e+00> : vector<5x128xf32>
    %31 = tpu.matmul %30, %29, %cst_13 {dimension_numbers = #tpu.dot_dimension_numbers<[1], [0], [0], [1], [0, 0, 1, 1], [], []>} : vector<5x10xf32>, vector<10x128xf32>, vector<5x128xf32> -> vector<5x128xf32>
    %c16_14 = arith.constant 16 : index
    %c10 = arith.constant 10 : index
    %32 = vector.load %arg1[%c16_14, %c10] : memref<32x16xf32, #tpu.memory_space<vmem>>, vector<5x1xf32>
    %c16_15 = arith.constant 16 : index
    %c11 = arith.constant 11 : index
    %33 = vector.load %arg1[%c16_15, %c11] : memref<32x16xf32, #tpu.memory_space<vmem>>, vector<5x1xf32>
    %cst_16 = arith.constant dense<0.000000e+00> : vector<5xf32>
    %34 = vector.multi_reduction <add>, %31, %cst_16 [1] : vector<5x128xf32> to vector<5xf32>
    %35 = vector.shape_cast %34 : vector<5xf32> to vector<5x1xf32>
    %cst_17 = arith.constant 7.812500e-03 : f32
    %36 = vector.broadcast %cst_17 : f32 to vector<5x1xf32>
    %37 = arith.mulf %35, %36 : vector<5x1xf32>
    %38 = arith.mulf %31, %31 : vector<5x128xf32>
    %cst_18 = arith.constant dense<0.000000e+00> : vector<5xf32>
    %39 = vector.multi_reduction <add>, %38, %cst_18 [1] : vector<5x128xf32> to vector<5xf32>
    %40 = vector.shape_cast %39 : vector<5xf32> to vector<5x1xf32>
    %cst_19 = arith.constant 7.812500e-03 : f32
    %41 = vector.broadcast %cst_19 : f32 to vector<5x1xf32>
    %42 = arith.mulf %40, %41 : vector<5x1xf32>
    %43 = arith.mulf %37, %37 : vector<5x1xf32>
    %44 = arith.subf %42, %43 : vector<5x1xf32>
    %cst_20 = arith.constant 9.99999974E-6 : f32
    %45 = vector.broadcast %cst_20 : f32 to vector<5x1xf32>
    %46 = arith.addf %44, %45 : vector<5x1xf32>
    %47 = math.rsqrt %46 : vector<5x1xf32>
    %48 = arith.mulf %47, %32 : vector<5x1xf32>
    %49 = arith.mulf %37, %48 : vector<5x1xf32>
    %50 = arith.subf %33, %49 : vector<5x1xf32>
    %51 = vector.broadcast %48 : vector<5x1xf32> to vector<5x128xf32>
    %52 = arith.mulf %31, %51 : vector<5x128xf32>
    %53 = vector.broadcast %50 : vector<5x1xf32> to vector<5x128xf32>
    %54 = arith.addf %52, %53 : vector<5x128xf32>
    %cst_21 = arith.constant 0.000000e+00 : f32
    %cst_22 = arith.constant 6.000000e+00 : f32
    %55 = vector.broadcast %cst_21 : f32 to vector<5x128xf32>
    %56 = arith.maximumf %55, %54 : vector<5x128xf32>
    %57 = vector.broadcast %cst_22 : f32 to vector<5x128xf32>
    %58 = arith.minimumf %57, %56 : vector<5x128xf32>
    %c24 = arith.constant 24 : index
    %c0_23 = arith.constant 0 : index
    %59 = vector.load %arg1[%c24, %c0_23] : memref<32x16xf32, #tpu.memory_space<vmem>>, vector<2x5xf32>
    %cst_24 = arith.constant dense<0.000000e+00> : vector<2x128xf32>
    %60 = tpu.matmul %59, %58, %cst_24 {dimension_numbers = #tpu.dot_dimension_numbers<[1], [0], [0], [1], [0, 0, 1, 1], [], []>} : vector<2x5xf32>, vector<5x128xf32>, vector<2x128xf32> -> vector<2x128xf32>
    %c24_25 = arith.constant 24 : index
    %c5_26 = arith.constant 5 : index
    %61 = vector.load %arg1[%c24_25, %c5_26] : memref<32x16xf32, #tpu.memory_space<vmem>>, vector<2x1xf32>
    %62 = vector.broadcast %61 : vector<2x1xf32> to vector<2x128xf32>
    %63 = arith.addf %60, %62 : vector<2x128xf32>
    %64 = arith.negf %63 : vector<2x128xf32>
    %65 = math.exp %64 : vector<2x128xf32>
    %cst_27 = arith.constant 1.000000e+00 : f32
    %66 = vector.broadcast %cst_27 : f32 to vector<2x128xf32>
    %67 = arith.addf %66, %65 : vector<2x128xf32>
    %68 = arith.divf %66, %67 : vector<2x128xf32>
    %c0_28 = arith.constant 0 : index
    %c0_29 = arith.constant 0 : index
    %69 = vector.load %arg2[%c0_28, %c0_29] : memref<2x128xf32, #tpu.memory_space<vmem>>, vector<2x128xf32>
    tpu.vector_store %arg2[%c0_28, %c0_29], %68 {strides = array<i32>} : memref<2x128xf32, #tpu.memory_space<vmem>>, vector<2x128xf32>,
    return
  }
}

</mosaic_0001>

<llo_original>
// kernel: _generator_forward.1
$region0: #{_generator_forward.1}
  #allocation0 [shape = 'u32[]', space=smem, size = 0x4, offset = 0x4, fixed_abs, tag = 'smem constant byte address 0x4 - core index']
  #allocation1 [shape = 'u32[144,128]{1,0:T(1,128)}', space=vmem, size = 0x12000, scoped, tag = 'internal scratch']
  %s0 = inlined_call_operand.vmem [shape: f32[5,128], index: 0, kind: input, shape index: {}]
  %s1 = inlined_call_operand.vmem [shape: f32[32,16], index: 1, kind: input, shape index: {}]
  %s2 = inlined_call_operand.hbm [shape: f32[2,128], index: 2, kind: output, shape index: {}]
  %s3 = sld [smem:[#allocation0]]
  $region18: #{_generator_forward.1} parent=0
    _
  %s5 = ssub.s32 1, %s3
  %s6 = scalar_select 0, %s5, %s3
  $region1: #{_generator_forward.1} parent=0
    #allocation2 [shape = 'u8[1024]{0}', space=vmem, size = 0x400, scoped, tag = 'output window, operand 0, single buffered']
    #allocation3 [shape = 's32[1]{0}', space=sflag, size = 0x4, scoped, tag = 'scoped memory for _generator_forward.1']
    %7 = vsyncpa [#allocation3], 0
    // Predicated region
    $region2: #{_generator_forward.1} parent=1 // pred_check
      _
    $region3: #{_generator_forward.1} parent=1 // pred_check_branch
      %9 = sbr.rel (0) target = $region5
    $region4: #{_generator_forward.1} parent=1 // pred_region
      _
    $region5: #{_generator_forward.1} parent=1 // pred_fallthru
      _
    // Predicated region
    $region6: #{_generator_forward.1} parent=1 // pred_check
      _
    $region7: #{_generator_forward.1} parent=1 // pred_check_branch
      %11 = sbr.rel (0) target = $region9
    $region8: #{_generator_forward.1} parent=1 // pred_region
      _
    $region9: #{_generator_forward.1} parent=1 // pred_fallthru
      _
    %v12 = vld [vmem:[%s0] sm:$0x1f]
    %v13 = vld [vmem:[%s1] sm:$0xff]
    %v14 = vld [vmem:[%s1 + $0x8] sm:$0x3]
    %vm15 = vcmask 39936
    %v17 = vsel %vm15, %v13, 0
    %v20 = vsel %vm15, %v14, 0
    %vm22 = vcmask 1044480
    %v24 = vsel %vm22, %v12, 0
    %26 = vmatprep.subr.mxu0 0.0
    %27 = vmatpush1.msra.mxu0 %v24
    %28 = vmatprep.subr.mxu0 0.0
    %29 = vmatpush1.msra.mxu0 0.0
    %30 = vmatprep.subr.mxu0 0.0
    %31 = vmatpush1.msra.mxu0 0.0
    %32 = vmatprep.subr.mxu0 0.0
    %33 = vmatpush1.msra.mxu0 0.0
    %34 = vmatprep.subr.mxu0 0.0
    %35 = vmatpush1.msra.mxu0 0.0
    %36 = vmatprep.subr.mxu0 0.0
    %37 = vmatpush1.msra.mxu0 0.0
    %38 = vmatprep.subr.mxu0 0.0
    %39 = vmatpush1.msra.mxu0 0.0
    %40 = vmatprep.subr.mxu0 0.0
    %41 = vmatpush1.msra.mxu0 0.0
    %42 = vmatprep.subr.mxu0 0.0
    %43 = vmatpush1.msra.mxu0 0.0
    %44 = vmatprep.subr.mxu0 0.0
    %45 = vmatpush1.msra.mxu0 0.0
    %46 = vmatprep.subr.mxu0 0.0
    %47 = vmatpush1.msra.mxu0 0.0
    %48 = vmatprep.subr.mxu0 0.0
    %49 = vmatpush1.msra.mxu0 0.0
    %50 = vmatprep.subr.mxu0 0.0
    %51 = vmatpush1.msra.mxu0 0.0
    %52 = vmatprep.subr.mxu0 0.0
    %53 = vmatpush1.msra.mxu0 0.0
    %54 = vmatprep.subr.mxu0 0.0
    %55 = vmatpush1.msra.mxu0 0.0
    %56 = vmatprep.subr.mxu0 0.0
    %57 = vmatpush1.msra.mxu0 0.0
    %58 = vmatprep.subr.mxu0 0.0
    %59 = vmatpush1.msra.mxu0 0.0
    %60 = vmatprep.subr.mxu0 0.0
    %61 = vmatpush1.msra.mxu0 0.0
    %62 = vmatprep.subr.mxu0 0.0
    %63 = vmatpush1.msra.mxu0 0.0
    %64 = vmatprep.subr.mxu0 0.0
    %65 = vmatpush1.msra.mxu0 0.0
    %66 = vmatprep.subr.mxu0 0.0
    %67 = vmatpush1.msra.mxu0 0.0
    %68 = vmatprep.subr.mxu0 0.0
    %69 = vmatpush1.msra.mxu0 0.0
    %70 = vmatprep.subr.mxu0 0.0
    %71 = vmatpush1.msra.mxu0 0.0
    %72 = vmatprep.subr.mxu0 0.0
    %73 = vmatpush1.msra.mxu0 0.0
    %74 = vmatprep.subr.mxu0 0.0
    %75 = vmatpush1.msra.mxu0 0.0
    %76 = vmatprep.subr.mxu0 0.0
    %77 = vmatpush1.msra.mxu0 0.0
    %78 = vmatprep.subr.mxu0 0.0
    %79 = vmatpush1.msra.mxu0 0.0
    %80 = vmatprep.subr.mxu0 0.0
    %81 = vmatpush1.msra.mxu0 0.0
    %82 = vmatprep.subr.mxu0 0.0
    %83 = vmatpush1.msra.mxu0 0.0
    %84 = vmatprep.subr.mxu0 0.0
    %85 = vmatpush1.msra.mxu0 0.0
    %86 = vmatprep.subr.mxu0 0.0
    %87 = vmatpush1.msra.mxu0 0.0
    %88 = vmatprep.subr.mxu0 0.0
    %89 = vmatpush1.msra.mxu0 0.0
    %90 = vmatprep.mubr.f32.mxu0 0.0
    %91 = vmatmul.mubr.f32.gmra.mrb[0].mxu0 %v17
    %v92 = vpop.f32.mrb[0].mxu0
    %v93 = vadd.f32 0.0, %v92
    %v94 = vpop.f32.mrb[0].mxu0
    %95 = vmatprep.mubr.f32.mxu0 0.0
    %96 = vmatmul.mubr.f32.gmra.mrb[0].mxu0 %v20
    %v97 = vpop.f32.mrb[0].mxu0
    %v98 = vadd.f32 0.0, %v97
    %v99 = vpop.f32.mrb[0].mxu0
    %100 = vdwg.mxu0
    %101 = vadd.xlane.f32.xlu0 %v93
    %v102 = vpop.xlane.xlu0 %101
    %vm103 = vcmask 1041408
    %v104 = vsel %vm103, %v98, 0.0
    %105 = vadd.xlane.f32.xlu0 %v104
    %v106 = vpop.xlane.xlu0 %105
    %v107 = vmul.f32 %v102, 0.0078125
    %v108 = vmul.f32 %v106, 0.0078125
    %v109 = vmul.f32 %v93, %v93
    %v110 = vmul.f32 %v98, %v98
    %111 = vadd.xlane.f32.xlu0 %v109
    %v112 = vpop.xlane.xlu0 %111
    %v113 = vsel %vm103, %v110, 0.0
    %114 = vadd.xlane.f32.xlu0 %v113
    %v115 = vpop.xlane.xlu0 %114
    %v116 = vmul.f32 %v112, 0.0078125
    %v117 = vmul.f32 %v115, 0.0078125
    %v118 = vmul.f32 %v107, %v107
    %v119 = vmul.f32 %v108, %v108
    %v120 = vsub.f32 %v116, %v118
    %v121 = vsub.f32 %v117, %v119
    %v122 = vadd.f32 %v120, 1e-05
    %v123 = vadd.f32 %v121, 1e-05
    %v124 = vrsqrt.pop %v122
    %v125 = vrsqrt.pop %v123
    %v126 = vmul.f32 %v124, %v13
    %v127 = vmul.f32 %v125, %v14
    %v128 = vmul.f32 %v107, %v126
    %v129 = vmul.f32 %v108, %v127
    %132 = vrot.lane.b32.xlu0 %v128, 1
    %v133 = vpop.permute.xlu0 %132
    %134 = vrot.lane.b32.xlu0 %v129, 1
    %v135 = vpop.permute.xlu0 %134
    %v138 = vsub.f32 %v13, %v133
    %v139 = vsub.f32 %v14, %v135
    %141 = vset.pattern.permute.xlu0 5
    %142 = vperm.xlu0 %141, %v126
    %v143 = vpop.permute.xlu0 %142
    %146 = vset.pattern.permute.xlu0 5
    %147 = vperm.xlu0 %146, %v127
    %v148 = vpop.permute.xlu0 %147
    %v150 = vmul.f32 %v93, %v143
    %v151 = vmul.f32 %v98, %v148
    %153 = vset.pattern.permute.xlu0 6
    %154 = vperm.xlu0 %153, %v138
    %v155 = vpop.permute.xlu0 %154
    %158 = vset.pattern.permute.xlu0 6
    %159 = vperm.xlu0 %158, %v139
    %v160 = vpop.permute.xlu0 %159
    %v162 = vadd.f32 %v150, %v155
    %v163 = vadd.f32 %v151, %v160
    %v164 = vmax.f32 %v162, 0.0
    %v165 = vmax.f32 %v163, 0.0
    %v166 = vmin.f32 %v164, 6.0
    %v167 = vmin.f32 %v165, 6.0
    %v168 = vld [vmem:[%s1 + $0x10] sm:$0x1f]
    %vm169 = vcmask 80896
    %v171 = vsel %vm169, %v168, 0
    %v174 = vsel %vm103, %v167, 0
    %176 = vmatprep.subr.mxu0 0.0
    %177 = vmatpush1.msra.mxu0 %v166
    %178 = vmatprep.subr.mxu0 0.0
    %179 = vmatpush1.msra.mxu0 %v174
    %180 = vmatprep.subr.mxu0 0.0
    %181 = vmatpush1.msra.mxu0 0.0
    %182 = vmatprep.subr.mxu0 0.0
    %183 = vmatpush1.msra.mxu0 0.0
    %184 = vmatprep.subr.mxu0 0.0
    %185 = vmatpush1.msra.mxu0 0.0
    %186 = vmatprep.subr.mxu0 0.0
    %187 = vmatpush1.msra.mxu0 0.0
    %188 = vmatprep.subr.mxu0 0.0
    %189 = vmatpush1.msra.mxu0 0.0
    %190 = vmatprep.subr.mxu0 0.0
    %191 = vmatpush1.msra.mxu0 0.0
    %192 = vmatprep.subr.mxu0 0.0
    %193 = vmatpush1.msra.mxu0 0.0
    %194 = vmatprep.subr.mxu0 0.0
    %195 = vmatpush1.msra.mxu0 0.0
    %196 = vmatprep.subr.mxu0 0.0
    %197 = vmatpush1.msra.mxu0 0.0
    %198 = vmatprep.subr.mxu0 0.0
    %199 = vmatpush1.msra.mxu0 0.0
    %200 = vmatprep.subr.mxu0 0.0
    %201 = vmatpush1.msra.mxu0 0.0
    %202 = vmatprep.subr.mxu0 0.0
    %203 = vmatpush1.msra.mxu0 0.0
    %204 = vmatprep.subr.mxu0 0.0
    %205 = vmatpush1.msra.mxu0 0.0
    %206 = vmatprep.subr.mxu0 0.0
    %207 = vmatpush1.msra.mxu0 0.0
    %208 = vmatprep.subr.mxu0 0.0
    %209 = vmatpush1.msra.mxu0 0.0
    %210 = vmatprep.subr.mxu0 0.0
    %211 = vmatpush1.msra.mxu0 0.0
    %212 = vmatprep.subr.mxu0 0.0
    %213 = vmatpush1.msra.mxu0 0.0
    %214 = vmatprep.subr.mxu0 0.0
    %215 = vmatpush1.msra.mxu0 0.0
    %216 = vmatprep.subr.mxu0 0.0
    %217 = vmatpush1.msra.mxu0 0.0
    %218 = vmatprep.subr.mxu0 0.0
    %219 = vmatpush1.msra.mxu0 0.0
    %220 = vmatprep.subr.mxu0 0.0
    %221 = vmatpush1.msra.mxu0 0.0
    %222 = vmatprep.subr.mxu0 0.0
    %223 = vmatpush1.msra.mxu0 0.0
    %224 = vmatprep.subr.mxu0 0.0
    %225 = vmatpush1.msra.mxu0 0.0
    %226 = vmatprep.subr.mxu0 0.0
    %227 = vmatpush1.msra.mxu0 0.0
    %228 = vmatprep.subr.mxu0 0.0
    %229 = vmatpush1.msra.mxu0 0.0
    %230 = vmatprep.subr.mxu0 0.0
    %231 = vmatpush1.msra.mxu0 0.0
    %232 = vmatprep.subr.mxu0 0.0
    %233 = vmatpush1.msra.mxu0 0.0
    %234 = vmatprep.subr.mxu0 0.0
    %235 = vmatpush1.msra.mxu0 0.0
    %236 = vmatprep.subr.mxu0 0.0
    %237 = vmatpush1.msra.mxu0 0.0
    %238 = vmatprep.subr.mxu0 0.0
    %239 = vmatpush1.msra.mxu0 0.0
    %240 = vmatprep.mubr.f32.mxu0 0.0
    %241 = vmatmul.mubr.f32.gmra.mrb[0].mxu0 %v171
    %v242 = vpop.f32.mrb[0].mxu0
    %v243 = vadd.f32 0.0, %v242
    %v244 = vpop.f32.mrb[0].mxu0
    %245 = vdwg.mxu0
    %v246 = vsel %vm22, %v243, 0.0
    %247 = vadd.xlane.f32.xlu0 %v246
    %v248 = vpop.xlane.xlu0 %247
    %v249 = vmul.f32 %v248, 0.0078125
    %v250 = vmul.f32 %v243, %v243
    %v251 = vsel %vm22, %v250, 0.0
    %252 = vadd.xlane.f32.xlu0 %v251
    %v253 = vpop.xlane.xlu0 %252
    %v254 = vmul.f32 %v253, 0.0078125
    %v255 = vmul.f32 %v249, %v249
    %v256 = vsub.f32 %v254, %v255
    %v257 = vadd.f32 %v256, 1e-05
    %v258 = vrsqrt.pop %v257
    %v259 = vmul.f32 %v258, %v168
    %v260 = vmul.f32 %v249, %v259
    %262 = vrot.lane.b32.xlu0 %v260, 1
    %v263 = vpop.permute.xlu0 %262
    %v265 = vsub.f32 %v168, %v263
    %267 = vset.pattern.permute.xlu0 10
    %268 = vperm.xlu0 %267, %v259
    %v269 = vpop.permute.xlu0 %268
    %v271 = vmul.f32 %v243, %v269
    %273 = vset.pattern.permute.xlu0 11
    %274 = vperm.xlu0 %273, %v265
    %v275 = vpop.permute.xlu0 %274
    %v277 = vadd.f32 %v271, %v275
    %v278 = vmax.f32 %v277, 0.0
    %v279 = vmin.f32 %v278, 6.0
    %v280 = vld [vmem:[%s1 + $0x18] sm:$0x3]
    %282 = vset.pattern.permute.xlu0 5
    %283 = vperm.xlu0 %282, %v280
    %v284 = vpop.permute.xlu0 %283
    %v286 = vsel %vm15, %v280, 0
    %v289 = vsel %vm22, %v279, 0
    %291 = vmatprep.subr.mxu0 0.0
    %292 = vmatpush1.msra.mxu0 %v289
    %293 = vmatprep.subr.mxu0 0.0
    %294 = vmatpush1.msra.mxu0 0.0
    %295 = vmatprep.subr.mxu0 0.0
    %296 = vmatpush1.msra.mxu0 0.0
    %297 = vmatprep.subr.mxu0 0.0
    %298 = vmatpush1.msra.mxu0 0.0
    %299 = vmatprep.subr.mxu0 0.0
    %300 = vmatpush1.msra.mxu0 0.0
    %301 = vmatprep.subr.mxu0 0.0
    %302 = vmatpush1.msra.mxu0 0.0
    %303 = vmatprep.subr.mxu0 0.0
    %304 = vmatpush1.msra.mxu0 0.0
    %305 = vmatprep.subr.mxu0 0.0
    %306 = vmatpush1.msra.mxu0 0.0
    %307 = vmatprep.subr.mxu0 0.0
    %308 = vmatpush1.msra.mxu0 0.0
    %309 = vmatprep.subr.mxu0 0.0
    %310 = vmatpush1.msra.mxu0 0.0
    %311 = vmatprep.subr.mxu0 0.0
    %312 = vmatpush1.msra.mxu0 0.0
    %313 = vmatprep.subr.mxu0 0.0
    %314 = vmatpush1.msra.mxu0 0.0
    %315 = vmatprep.subr.mxu0 0.0
    %316 = vmatpush1.msra.mxu0 0.0
    %317 = vmatprep.subr.mxu0 0.0
    %318 = vmatpush1.msra.mxu0 0.0
    %319 = vmatprep.subr.mxu0 0.0
    %320 = vmatpush1.msra.mxu0 0.0
    %321 = vmatprep.subr.mxu0 0.0
    %322 = vmatpush1.msra.mxu0 0.0
    %323 = vmatprep.subr.mxu0 0.0
    %324 = vmatpush1.msra.mxu0 0.0
    %325 = vmatprep.subr.mxu0 0.0
    %326 = vmatpush1.msra.mxu0 0.0
    %327 = vmatprep.subr.mxu0 0.0
    %328 = vmatpush1.msra.mxu0 0.0
    %329 = vmatprep.subr.mxu0 0.0
    %330 = vmatpush1.msra.mxu0 0.0
    %331 = vmatprep.subr.mxu0 0.0
    %332 = vmatpush1.msra.mxu0 0.0
    %333 = vmatprep.subr.mxu0 0.0
    %334 = vmatpush1.msra.mxu0 0.0
    %335 = vmatprep.subr.mxu0 0.0
    %336 = vmatpush1.msra.mxu0 0.0
    %337 = vmatprep.subr.mxu0 0.0
    %338 = vmatpush1.msra.mxu0 0.0
    %339 = vmatprep.subr.mxu0 0.0
    %340 = vmatpush1.msra.mxu0 0.0
    %341 = vmatprep.subr.mxu0 0.0
    %342 = vmatpush1.msra.mxu0 0.0
    %343 = vmatprep.subr.mxu0 0.0
    %344 = vmatpush1.msra.mxu0 0.0
    %345 = vmatprep.subr.mxu0 0.0
    %346 = vmatpush1.msra.mxu0 0.0
    %347 = vmatprep.subr.mxu0 0.0
    %348 = vmatpush1.msra.mxu0 0.0
    %349 = vmatprep.subr.mxu0 0.0
    %350 = vmatpush1.msra.mxu0 0.0
    %351 = vmatprep.subr.mxu0 0.0
    %352 = vmatpush1.msra.mxu0 0.0
    %353 = vmatprep.subr.mxu0 0.0
    %354 = vmatpush1.msra.mxu0 0.0
    %355 = vmatprep.mubr.f32.mxu0 0.0
    %356 = vmatmul.mubr.f32.gmra.mrb[0].mxu0 %v286
    %v357 = vpop.f32.mrb[0].mxu0
    %v358 = vadd.f32 %v284, %v357
    %v359 = vpop.f32.mrb[0].mxu0
    %360 = vdwg.mxu0
    %v361 = vxor.u32 %v358, 2147483648
    %v362 = vmul.f32 %v361, 1.442695
    %v363 = vpow.pop %v362
    %v364 = vadd.f32 %v363, 1.0
    %v365 = vrcp.pop %v364
    %v366 = vmul.f32 1.0, %v365
    %367 = vst [vmem:[#allocation2] sm:$0x3] %v366
    // Predicated region
    $region10: #{_generator_forward.1} parent=1 // pred_check
      _
    $region11: #{_generator_forward.1} parent=1 // pred_check_branch
      %369 = sbr.rel (0) target = $region13
    $region12: #{_generator_forward.1} parent=1 // pred_region
      %s371 = ssub.s32 32, 32
      %372 = vsyncadd [#allocation3], %s371
      %s374 = sshll.u32 [#allocation2], 4
      %s375 = int_to_ptr.vmem [resolvable:$true] %s374
      %377 = dma.vmem_to_hbm [thread:$0]  %s375, 32, %s2, [#allocation3]
    $region13: #{_generator_forward.1} parent=1 // pred_fallthru
      _
    // Predicated region
    $region14: #{_generator_forward.1} parent=1 // pred_check
      _
    $region15: #{_generator_forward.1} parent=1 // pred_check_branch
      %379 = sbr.rel (0) target = $region17
    $region16: #{_generator_forward.1} parent=1 // pred_region
      %380 = dma.done [#allocation3], 32
    $region17: #{_generator_forward.1} parent=1 // pred_fallthru
      _
    %381 = vsyncpa [#allocation3], 1

</llo_original>
